<compile_context>
chip_gen: v7x
topology: tpu7x:2x2x1
jax: 0.10.0
libtpu: 0.0.40
codegen_flags: <defaults>
</compile_context>

<pallas_src>
import functools

import jax
import jax.numpy as jnp
from jax.experimental import pallas as pl
from jax.experimental.pallas import tpu as pltpu


# ---------------------------------------------------------------------------
# per-generation tiling configuration
# ---------------------------------------------------------------------------
def _tpu_tile_config():
    kind = ""
    try:
        kind = jax.devices()[0].device_kind.lower()
    except Exception:
        pass
    if "v5 lite" in kind or "v5e" in kind or "v5lite" in kind:
        # 4x128x128 MXU, ~820 GB/s HBM: compute-bound well before huge tiles.
        return dict(block_m=256, block_n=512, align=128,
                    vmem_limit=64 * 1024 * 1024, dout_major=False)
    if "v6" in kind:
        # 2x256x256 MXU, 128 MiB VMEM: go wide.
        return dict(block_m=1024, block_n=1024, align=256,
                    vmem_limit=96 * 1024 * 1024, dout_major=False)
    if "v7" in kind:
        # 2x256x256 MXU but only 64 MiB VMEM/TC and 2 TCs sharing HBM:
        # 256-aligned tiles, tighter budget, megacore split along d_out.
        return dict(block_m=512, block_n=1024, align=256,
                    vmem_limit=48 * 1024 * 1024, dout_major=True)
    # unknown / older generations: conservative middle ground.
    return dict(block_m=256, block_n=512, align=128,
                vmem_limit=48 * 1024 * 1024, dout_major=False)


def _round_up(x, a):
    return ((x + a - 1) // a) * a


def _largest_tile(dim, pref, align):
    """Largest multiple-of-`align` (falling back to 128) divisor of `dim` <= pref."""
    unit = None
    for a in (align, 128):
        if dim % a == 0:
            unit = a
            break
    if unit is None:
        # TODO(synk): non-128-multiple feature dims get a single full-width tile;
        # add masked edge tiles if such shapes show up in practice.
        return dim
    pref = max(pref, unit)
    best = unit
    t = unit
    while t <= min(dim, pref):
        if dim % t == 0:
            best = t
        t += unit
    return best


# ---------------------------------------------------------------------------
# grouped (block-per-expert) matmul kernel with fused gate epilogue
# grid = (num_blocks, d_out_tiles)  or  (d_out_tiles, num_blocks) on v7x
# ---------------------------------------------------------------------------
def _grouped_matmul_kernel(block_expert_ref, block_valid_ref,
                           x_ref, g_ref, w_ref, o_ref, *, b_axis):
    """One (bm, d_in) @ (d_in, tn) MXU matmul, gate-scaled in the epilogue."""
    del block_expert_ref  # consumed by the weight index_map only
    b = pl.program_id(b_axis)
    is_real = block_valid_ref[b] > 0

    @pl.when(is_real)
    def _compute():
        acc = jnp.dot(x_ref[...], w_ref[...],
                      preferred_element_type=jnp.float32)
        o_ref[...] = (acc * g_ref[...].astype(jnp.float32)).astype(o_ref.dtype)

    @pl.when(jnp.logical_not(is_real))
    def _phantom():
        # Phantom padding blocks: the weight DMA is already suppressed by the
        # index_map; just emit zeros (these rows scatter to a throwaway slot).
        o_ref[...] = jnp.zeros_like(o_ref)


def scatter2scatter(x, w, sorted_expert_idxs, sorted_scattered_idxs,
                    expert_offsets, k, gates=None, x_grouped=False,
                    y_grouped=False, out_dtype=None, config=None):
    """Grouped expert matmul.

    gates is None : y[p or ss[p]] = x[p or ss[p]//k] @ w[sorted_expert_idxs[p]]
    gates given   : out[n] = sum_j gates[n, j] * y_row(n, j)   (fused combine)
    """
    num_experts, d_in, d_out = w.shape
    m = int(sorted_expert_idxs.shape[0])
    out_dtype = out_dtype or x.dtype
    compute_dtype = w.dtype

    cfg = _tpu_tile_config()
    if config:
        cfg = dict(cfg, **config)
    align = cfg["align"]
    in_item = jnp.dtype(compute_dtype).itemsize
    out_item = jnp.dtype(out_dtype).itemsize
    budget = int(cfg["vmem_limit"] * 0.85)   # headroom for Mosaic internals

    # --- tile selection ------------------------------------------------------
    # Output-column strip: double-buffered (d_in, tn) weight tile <= ~half budget.
    tn_cap = max(128, budget // (4 * d_in * in_item))
    tn = _largest_tile(d_out, min(cfg["block_n"], tn_cap), align)
    # Row block: ~bm flop per weight byte; capped by tokens/expert (padding
    # waste) and by the K-resident activation strip + output tile VMEM.
    bm = max(align, min(cfg["block_m"],
                        _round_up(max(1, -(-m // num_experts)), align)))
    bm_cap = (budget // 2) // (2 * (d_in * in_item + tn * out_item))
    if bm > bm_cap:
        bm = max(8, (bm_cap // 8) * 8)

    ss = sorted_scattered_idxs.astype(jnp.int32)
    offs = expert_offsets.astype(jnp.int32)                      # inclusive cumsum

    # ---- block -> expert / row mapping, derived from expert_offsets ---------
    counts = offs - jnp.concatenate([jnp.zeros((1,), jnp.int32), offs[:-1]])
    starts = offs - counts
    blocks_per_expert = (counts + bm - 1) // bm
    block_cum = jnp.cumsum(blocks_per_expert)
    first_block = block_cum - blocks_per_expert
    num_real_blocks = block_cum[-1]

    num_blocks = -(-m // bm) + num_experts                       # static upper bound
    block_ids = jnp.arange(num_blocks, dtype=jnp.int32)
    block_expert_raw = jnp.minimum(
        jnp.searchsorted(block_cum, block_ids, side="right"),
        num_experts - 1).astype(jnp.int32)
    block_valid = (block_ids < num_real_blocks).astype(jnp.int32)
    # Phantom blocks inherit the last real block's expert so their weight block
    # index never changes -> Pallas skips the (useless) weight DMA entirely.
    last_expert = block_expert_raw[jnp.maximum(num_real_blocks - 1, 0)]
    block_expert = jnp.where(block_valid > 0, block_expert_raw,
                             last_expert).astype(jnp.int32)

    block_local = block_ids - first_block[block_expert_raw]
    block_row_start = starts[block_expert_raw] + block_local * bm
    row_sorted_pos = (block_row_start[:, None]
                      + jnp.arange(bm, dtype=jnp.int32)[None, :])
    row_valid = row_sorted_pos < offs[block_expert_raw][:, None]
    row_pos_c = jnp.clip(row_sorted_pos, 0, m - 1)
    scat = ss[row_pos_c]

    src = row_pos_c if x_grouped else scat // k                  # gather source rows
    dst = row_sorted_pos if y_grouped else scat                  # ungated output rows

    # Block-sized gather of activations (one XLA gather, lane-dense rows), cast
    # once to the bf16 compute dtype.
    x_padded = x[src.reshape(-1)].astype(compute_dtype)          # (num_blocks*bm, d_in)

    # Per-row gate (1.0 for the ungated path, 0.0 for padding rows).
    if gates is None:
        row_gate = row_valid.astype(jnp.float32)
    else:
        gflat = gates.reshape(-1).astype(jnp.float32)
        row_gate = jnp.where(row_valid, gflat[jnp.clip(dst, 0, m - 1)], 0.0)
    row_gate = row_gate.reshape(num_blocks * bm, 1)

    # --- grid / specs ---------------------------------------------------------
    n_j = d_out // tn
    if cfg["dout_major"]:
        # v7x megacore: leading (parallel) axis = output columns, so the two
        # TensorCores stream disjoint halves of every expert's weights.
        grid = (n_j, num_blocks)
        x_map = lambda j, b, be, bv: (b, 0)
        g_map = lambda j, b, be, bv: (b, 0)
        w_map = lambda j, b, be, bv: (be[b], 0, j * bv[b])
        o_map = lambda j, b, be, bv: (b, j)
        b_axis = 1
    else:
        grid = (num_blocks, n_j)
        x_map = lambda b, j, be, bv: (b, 0)
        g_map = lambda b, j, be, bv: (b, 0)
        w_map = lambda b, j, be, bv: (be[b], 0, j * bv[b])
        o_map = lambda b, j, be, bv: (b, j)
        b_axis = 0

    # TODO(synk): deeper weight buffering (pl.Buffered(3)) is not used here
    # because the full-K weight strips are already multi-MiB DMAs; revisit if
    # profiling shows exposed DMA latency at block boundaries.
    y_padded = pl.pallas_call(
        functools.partial(_grouped_matmul_kernel, b_axis=b_axis),
        grid_spec=pltpu.PrefetchScalarGridSpec(
            num_scalar_prefetch=2,
            grid=grid,
            in_specs=[
                pl.BlockSpec((bm, d_in), x_map),        # K- and J-resident activations
                pl.BlockSpec((bm, 1), g_map),           # per-row gate
                pl.BlockSpec((None, d_in, tn), w_map),  # full-K weight column strip
            ],
            out_specs=pl.BlockSpec((bm, tn), o_map),
        ),
        out_shape=jax.ShapeDtypeStruct((num_blocks * bm, d_out), out_dtype),
        compiler_params=pltpu.CompilerParams(
            dimension_semantics=("parallel", "parallel"),
            vmem_limit_bytes=int(cfg["vmem_limit"]),
        ),
    )(block_expert, block_valid, x_padded, row_gate, w)

    if gates is None:
        # Un-scatter: padding / phantom rows land on a throwaway slot m.
        dst_flat = jnp.where(row_valid, dst, m).reshape(-1)
        y = jnp.zeros((m + 1, d_out), out_dtype).at[dst_flat].set(y_padded)
        return y[:m]

    # Fused gate combine: scatter-ADD the gate-scaled rows onto their token.
    n_tok = gates.shape[0]
    tok = jnp.where(row_valid, dst // k, n_tok).reshape(-1)
    acc = jnp.zeros((n_tok + 1, d_out), jnp.float32).at[tok].add(
        y_padded.astype(jnp.float32))
    return acc[:n_tok].astype(out_dtype)


# ---------------------------------------------------------------------------
# module-level forward
# ---------------------------------------------------------------------------
def parallel_linear(inputs, expert_weights, k, sorted_expert_idxs,
                    sorted_scattered_idxs, padded_block_idxs, expert_offsets,
                    gates=None, grouped_in=False, grouped_out=False):
    # TODO(synk): padded_block_idxs encodes Triton's BLOCK_M padding scheme; the
    # TPU kernel derives its own block->expert map from expert_offsets for its
    # own block size, so the argument is accepted but unused.
    del padded_block_idxs
    return scatter2scatter(inputs, expert_weights, sorted_expert_idxs,
                           sorted_scattered_idxs, expert_offsets, k,
                           gates=gates, x_grouped=grouped_in,
                           y_grouped=grouped_out)


class ParallelExperts:
    """JAX port of scattermoe ParallelExperts (forward only)."""

    def __init__(self, num_experts, input_size, output_size, key,
                 param_dtype=jnp.float32, compute_dtype=jnp.bfloat16):
        # nn.init.normal_(std=0.02), stored like the PyTorch module as
        # (E, output_size, input_size).
        self.weight = 0.02 * jax.random.normal(
            key, (num_experts, output_size, input_size), dtype=param_dtype)
        # Pre-transposed / pre-cast compute copy built ONCE (no per-forward
        # transpose or cast pass over HBM).
        # TODO(synk): on v7x, fp8(e4m3) weights + per-channel dequant in the
        # epilogue would halve weight streaming; kept at bf16 for parity.
        self.weight_t = jnp.transpose(self.weight, (0, 2, 1)).astype(compute_dtype)
        self.num_experts = num_experts
        self.input_size = input_size
        self.output_size = output_size

    def __call__(self, inputs, k, sorted_expert_idxs, sorted_scattered_idxs,
                 padded_block_idxs, expert_offsets, gates=None,
                 grouped_in=False, grouped_out=False):
        return parallel_linear(inputs, self.weight_t, k, sorted_expert_idxs,
                               sorted_scattered_idxs, padded_block_idxs,
                               expert_offsets, gates=gates,
                               grouped_in=grouped_in, grouped_out=grouped_out)


# ---------------------------------------------------------------------------
# Pure-JAX reference (uses the same bf16 compute weights as the kernel).
# ---------------------------------------------------------------------------
def reference_forward(x, w_t, k, se, ss, gates):
    cd = w_t.dtype
    xg = x[ss // k].astype(cd)                                    # (M, d_in)
    y_sorted = jnp.einsum('nd,ndo->no', xg, w_t[se],
                          preferred_element_type=jnp.float32).astype(x.dtype)
    m = se.shape[0]
    d_out = y_sorted.shape[-1]
    y_scat = jnp.zeros((m, d_out), x.dtype).at[ss].set(y_sorted)
    if gates is None:
        return y_scat
    n, kk = gates.shape
    return jnp.einsum('nk,nkd->nd', gates.astype(jnp.float32),
                      y_scat.reshape(n, kk, d_out).astype(jnp.float32)
                      ).astype(x.dtype)


if __name__ == "__main__":
    key = jax.random.PRNGKey(0)

    def make_routing(k_route, n_tokens, top_k, n_experts):
        expert_idxs = jax.random.randint(k_route, (n_tokens, top_k), 0, n_experts)
        flat = expert_idxs.reshape(-1).astype(jnp.int32)
        order = jnp.argsort(flat).astype(jnp.int32)
        se = flat[order]
        ss = order
        offs = jnp.cumsum(jnp.bincount(flat, length=n_experts)).astype(jnp.int32)
        return se, ss, offs

    # ---- tests 1 & 2: tiny module, default per-generation config ------------
    E, d_in, d_out, N, K = 4, 64, 64, 8, 2
    k_w, k_x, k_r, k_g, key = jax.random.split(key, 5)
    experts = ParallelExperts(E, d_in, d_out, k_w)
    x = jax.random.normal(k_x, (N, d_in), dtype=jnp.float32)
    se, ss, offs = make_routing(k_r, N, K, E)
    padded_block_idxs = jnp.zeros((1,), jnp.int32)        # Triton-specific, unused
    gates = jax.nn.softmax(jax.random.normal(k_g, (N, K), jnp.float32), axis=-1)

    out = experts(x, K, se, ss, padded_block_idxs, offs, gates=gates)
    out = jax.block_until_ready(out)
    ref = reference_forward(x, experts.weight_t, K, se, ss, gates)
    assert out.shape == (N, d_out)
    assert jnp.allclose(out, ref, atol=1e-3, rtol=1e-3), "gated mismatch vs reference"

    out_ng = experts(x, K, se, ss, padded_block_idxs, offs, gates=None)
    out_ng = jax.block_until_ready(out_ng)
    ref_ng = reference_forward(x, experts.weight_t, K, se, ss, None)
    assert out_ng.shape == (N * K, d_out)
    assert jnp.allclose(out_ng, ref_ng, atol=1e-3, rtol=1e-3), "ungated mismatch"

    # ---- test 3: multiple output-column tiles + d_out-major (v7x) grid ------
    E2, d_in2, d_out2, N2, K2 = 4, 128, 256, 16, 2
    k_w2, k_x2, k_r2, k_g2, key = jax.random.split(key, 5)
    experts2 = ParallelExperts(E2, d_in2, d_out2, k_w2)
    x2 = jax.random.normal(k_x2, (N2, d_in2), dtype=jnp.float32)
    se2, ss2, offs2 = make_routing(k_r2, N2, K2, E2)
    gates2 = jax.nn.softmax(jax.random.normal(k_g2, (N2, K2), jnp.float32), axis=-1)
    cfg_override = dict(block_m=128, block_n=128, align=128, dout_major=True)
    out2 = scatter2scatter(x2, experts2.weight_t, se2, ss2, offs2, K2,
                           gates=gates2, config=cfg_override)
    out2 = jax.block_until_ready(out2)
    ref2 = reference_forward(x2, experts2.weight_t, K2, se2, ss2, gates2)
    assert out2.shape == (N2, d_out2)
    assert jnp.allclose(out2, ref2, atol=1e-3, rtol=1e-3), "dout-major mismatch"

    print("KERNEL_OK")
</pallas_src>

<mosaic_0001>
module attributes {stable_mosaic.version = 11 : i64} {
  func.func @_grouped_matmul_kernel(%arg0: i32, %arg1: i32, %arg2: memref<5xi32, #tpu.memory_space<smem>>, %arg3: memref<5xi32, #tpu.memory_space<smem>>, %arg4: memref<128x64xbf16, #tpu.memory_space<vmem>>, %arg5: memref<128x1xf32, #tpu.memory_space<vmem>>, %arg6: memref<1x64x64xbf16, #tpu.memory_space<vmem>>, %arg7: memref<128x64xf32, #tpu.memory_space<vmem>>) attributes {dimension_semantics = [#tpu.dimension_semantics<parallel>, #tpu.dimension_semantics<parallel>], iteration_bounds = array<i64: 5, 1>, scalar_prefetch = 2 : i64, scratch_operands = 0 : i64, tpu.core_type = #tpu.core_type<tc>, window_params = [{transform_indices = @transform_0, window_bounds = array<i64: 128, 64>}, {transform_indices = @transform_1, window_bounds = array<i64: 128, 1>}, {transform_indices = @transform_2, window_bounds = array<i64: 1, 64, 64>}, {transform_indices = @transform_3, window_bounds = array<i64: 128, 64>}]} {
    %0 = arith.index_cast %arg0 : i32 to index
    %1 = memref.load %arg3[%0] : memref<5xi32, #tpu.memory_space<smem>>
    %c0_i32 = arith.constant 0 : i32
    %2 = arith.cmpi sgt, %1, %c0_i32 : i32
    %3 = arith.extui %2 : i1 to i32
    %c0_i32_0 = arith.constant 0 : i32
    %4 = arith.cmpi ne, %3, %c0_i32_0 : i32
    scf.if %4 {
      %c0 = arith.constant 0 : index
      %c0_2 = arith.constant 0 : index
      %8 = vector.load %arg4[%c0, %c0_2] : memref<128x64xbf16, #tpu.memory_space<vmem>>, vector<128x64xbf16>
      %c0_3 = arith.constant 0 : index
      %c0_4 = arith.constant 0 : index
      %c0_5 = arith.constant 0 : index
      %9 = vector.load %arg6[%c0_3, %c0_4, %c0_5] : memref<1x64x64xbf16, #tpu.memory_space<vmem>>, vector<1x64x64xbf16>
      %10 = vector.shape_cast %9 : vector<1x64x64xbf16> to vector<64x64xbf16>
      %cst = arith.constant dense<0.000000e+00> : vector<128x64xf32>
      %11 = tpu.matmul %8, %10, %cst {dimension_numbers = #tpu.dot_dimension_numbers<[1], [0], [0], [1], [0, 0, 1, 1], [], []>} : vector<128x64xbf16>, vector<64x64xbf16>, vector<128x64xf32> -> vector<128x64xf32>
      %c0_6 = arith.constant 0 : index
      %c0_7 = arith.constant 0 : index
      %12 = vector.load %arg5[%c0_6, %c0_7] : memref<128x1xf32, #tpu.memory_space<vmem>>, vector<128x1xf32>
      %13 = vector.broadcast %12 : vector<128x1xf32> to vector<128x64xf32>
      %14 = arith.mulf %11, %13 : vector<128x64xf32>
      %c0_8 = arith.constant 0 : index
      %c0_9 = arith.constant 0 : index
      %15 = vector.load %arg7[%c0_8, %c0_9] : memref<128x64xf32, #tpu.memory_space<vmem>>, vector<128x64xf32>
      tpu.vector_store %arg7[%c0_8, %c0_9], %14 {strides = array<i32>} : memref<128x64xf32, #tpu.memory_space<vmem>>, vector<128x64xf32>,
    } else {
    }
    %true = arith.constant true
    %5 = arith.xori %2, %true : i1
    %6 = arith.extui %5 : i1 to i32
    %c0_i32_1 = arith.constant 0 : i32
    %7 = arith.cmpi ne, %6, %c0_i32_1 : i32
    scf.if %7 {
      %cst = arith.constant 0.000000e+00 : f32
      %8 = vector.broadcast %cst : f32 to vector<128x64xf32>
      %c0 = arith.constant 0 : index
      %c0_2 = arith.constant 0 : index
      %9 = vector.load %arg7[%c0, %c0_2] : memref<128x64xf32, #tpu.memory_space<vmem>>, vector<128x64xf32>
      tpu.vector_store %arg7[%c0, %c0_2], %8 {strides = array<i32>} : memref<128x64xf32, #tpu.memory_space<vmem>>, vector<128x64xf32>,
    } else {
    }
    return
  }
  func.func @transform_0(%arg0: i32, %arg1: i32, %arg2: memref<5xi32, #tpu.memory_space<smem>>, %arg3: memref<5xi32, #tpu.memory_space<smem>>) -> (i32, i32) {
    %c0_i32 = arith.constant 0 : i32
    %c0_i32_0 = arith.constant 0 : i32
    return %arg0, %c0_i32 : i32, i32
  }
  func.func @transform_1(%arg0: i32, %arg1: i32, %arg2: memref<5xi32, #tpu.memory_space<smem>>, %arg3: memref<5xi32, #tpu.memory_space<smem>>) -> (i32, i32) {
    %c0_i32 = arith.constant 0 : i32
    %c0_i32_0 = arith.constant 0 : i32
    return %arg0, %c0_i32 : i32, i32
  }
  func.func @transform_2(%arg0: i32, %arg1: i32, %arg2: memref<5xi32, #tpu.memory_space<smem>>, %arg3: memref<5xi32, #tpu.memory_space<smem>>) -> (i32, i32, i32) {
    %0 = arith.index_cast %arg0 : i32 to index
    %1 = memref.load %arg2[%0] : memref<5xi32, #tpu.memory_space<smem>>
    %2 = arith.index_cast %arg0 : i32 to index
    %3 = memref.load %arg3[%2] : memref<5xi32, #tpu.memory_space<smem>>
    %4 = arith.muli %arg1, %3 : i32
    %c0_i32 = arith.constant 0 : i32
    %c0_i32_0 = arith.constant 0 : i32
    return %1, %c0_i32, %4 : i32, i32, i32
  }
  func.func @transform_3(%arg0: i32, %arg1: i32, %arg2: memref<5xi32, #tpu.memory_space<smem>>, %arg3: memref<5xi32, #tpu.memory_space<smem>>) -> (i32, i32) {
    %c0_i32 = arith.constant 0 : i32
    return %arg0, %arg1 : i32, i32
  }
}

</mosaic_0001>

<llo_original>
// kernel: tpu_custom_call.1
$region0: #{tpu_custom_call.1}
  #allocation0 [shape = 'u32[]', space=smem, size = 0x4, offset = 0x4, fixed_abs, tag = 'smem constant byte address 0x4 - core index']
  #allocation1 [shape = 'u32[144,128]{1,0:T(1,128)}', space=vmem, size = 0x12000, scoped, tag = 'internal scratch']
  #allocation2 [shape = 's32[1]{0}', space=sflag, size = 0x4, scoped, tag = 'scoped memory for tpu_custom_call.1']
  #allocation3 [shape = 'u8[512]{0}', space=smem, size = 0x200, scoped, tag = 'prefetched SMEM operand 0']
  #allocation4 [shape = 'u8[512]{0}', space=smem, size = 0x200, scoped, tag = 'prefetched SMEM operand 1']
  %s0 = inlined_call_operand.vmem [shape: s32[5], index: 0, kind: input, shape index: {}]
  %s1 = inlined_call_operand.vmem [shape: s32[5], index: 1, kind: input, shape index: {}]
  %s2 = inlined_call_operand.vmem [shape: bf16[640,64], index: 2, kind: input, shape index: {}]
  %s3 = inlined_call_operand.vmem [shape: f32[640,1], index: 3, kind: input, shape index: {}]
  %s4 = inlined_call_operand.vmem [shape: bf16[4,64,64], index: 4, kind: input, shape index: {}]
  %s5 = inlined_call_operand.vmem [shape: f32[640,64], index: 5, kind: output, shape index: {}]
  %s6 = sld [smem:[#allocation0]]
  $region53: #{tpu_custom_call.1} parent=0
    _
  %s8 = ssub.s32 1, %s6
  %s9 = scalar_select 0, %s8, %s6
  %s10 = sshll.u32 %s0, 4
  %s11 = int_to_ptr.vmem [resolvable:$true] %s10
  %13 = dma.vmem_to_smem %s11, 16, [#allocation3], [#allocation2]
  %s14 = sshll.u32 %s1, 4
  %s15 = int_to_ptr.vmem [resolvable:$true] %s14
  %17 = dma.vmem_to_smem %s15, 16, [#allocation4], [#allocation2]
  %18 = dma.done [#allocation2], 32
  %19 = sfence
  loop: start=0, step=1, limit=7
  $region2: #{tpu_custom_call.1} parent=0 // loop_pre_header
    _
  $region3: #{tpu_custom_call.1} parent=0 // loop_header
    %s21 = sphi 0, %s25
    %p22 = scmp.ge.s32.totalorder %s21, 7
    %s28 = sphi 0, %s40
    %s29 = sphi 0, %s36
    %s30 = sphi 0, %s28
    %s31 = sphi 0, %s29
    %s32 = sphi 0, %s30
    %s33 = sphi 0, %s31
    %s43 = sphi 0, %s45
    %s46 = sphi 0, %s43
    %s47 = sphi 0, %s46
    %s63 = sphi 0, %s47
    %s69 = sphi 0, %s71
    %s72 = sphi 0, %s69
    %s73 = sphi 0, %s72
    %s89 = sphi 0, %s73
    %s103 = sphi 0, %s105
    %s106 = sphi 0, %s103
    %s107 = sphi 0, %s106
    %s123 = sphi 0, %s107
    %s131 = sphi 0, %s133
    %s134 = sphi 0, %s131
    %s135 = sphi 0, %s134
    %s151 = sphi 0, %s135
  $region4: #{tpu_custom_call.1} parent=0 // loop_header_branch
    %24 = sbr.rel (%p22) target = $region8
  $region5: #{tpu_custom_call.1} parent=0 // loop_body
    %s26 = ssub.s32 %s21, 1
    %s27 = ssub.s32 %s21, 2
    %s34 = sadd.s32 1, %s29
    %p35 = scmp.ge.s32.totalorder %s34, 1
    %s36 = scalar_select %p35, 0, %s34
    %s37 = sadd.s32 1, %s28
    %s38 = scalar_select %p35, %s37, %s28
    %p39 = scmp.ge.s32.totalorder %s38, 5
    %s40 = scalar_select %p39, 0, %s38
    %s41 = ssub.s32 %s28, %s40
    %p42 = scmp.eq.s32.totalorder %s41, 0
    %s44 = sadd.s32 %s43, 1
    %s45 = scalar_select %p42, %s43, %s44
    %p48 = pneg %p42
    %p49 = scmp.eq.s32.totalorder %s21, 4
    %p50 = por %p48, %p49
    %p51 = scmp.ne.s32.totalorder %s43, %s46
    %p52 = scmp.eq.s32.totalorder %s21, 0
    %p53 = por %p51, %p52
    %p54 = scmp.ne.s32.totalorder %s43, %s46
    %p55 = scmp.eq.s32.totalorder %s26, 4
    %p56 = por %p54, %p55
    %p57 = scmp.ne.s32.totalorder %s46, %s47
    %p58 = scmp.eq.s32.totalorder %s26, 0
    %p59 = por %p57, %p58
    %p60 = scmp.ne.s32.totalorder %s46, %s47
    %p61 = scmp.eq.s32.totalorder %s27, 4
    %p62 = por %p60, %p61
    %p64 = scmp.ne.s32.totalorder %s47, %s63
    %p65 = scmp.eq.s32.totalorder %s27, 0
    %p66 = por %p64, %p65
    %s67 = ssub.s32 %s28, %s40
    %p68 = scmp.eq.s32.totalorder %s67, 0
    %s70 = sadd.s32 %s69, 1
    %s71 = scalar_select %p68, %s69, %s70
    %p74 = pneg %p68
    %p75 = scmp.eq.s32.totalorder %s21, 4
    %p76 = por %p74, %p75
    %p77 = scmp.ne.s32.totalorder %s69, %s72
    %p78 = scmp.eq.s32.totalorder %s21, 0
    %p79 = por %p77, %p78
    %p80 = scmp.ne.s32.totalorder %s69, %s72
    %p81 = scmp.eq.s32.totalorder %s26, 4
    %p82 = por %p80, %p81
    %p83 = scmp.ne.s32.totalorder %s72, %s73
    %p84 = scmp.eq.s32.totalorder %s26, 0
    %p85 = por %p83, %p84
    %p86 = scmp.ne.s32.totalorder %s72, %s73
    %p87 = scmp.eq.s32.totalorder %s27, 4
    %p88 = por %p86, %p87
    %p90 = scmp.ne.s32.totalorder %s73, %s89
    %p91 = scmp.eq.s32.totalorder %s27, 0
    %p92 = por %p90, %p91
    %s93 = sld [smem:[#allocation3 + %s28]]
    %s94 = sld [smem:[#allocation4 + %s28]]
    %s95 = smul.u32 %s29, %s94
    %s96 = sld [smem:[#allocation3 + %s40]]
    %s97 = sld [smem:[#allocation4 + %s40]]
    %s98 = smul.u32 %s36, %s97
    %s99 = ssub.s32 %s93, %s96
    %s100 = ssub.s32 %s95, %s98
    %s101 = sor.u32 %s99, %s100
    %p102 = scmp.eq.s32.totalorder %s101, 0
    %s104 = sadd.s32 %s103, 1
    %s105 = scalar_select %p102, %s103, %s104
    %p108 = pneg %p102
    %p109 = scmp.eq.s32.totalorder %s21, 4
    %p110 = por %p108, %p109
    %p111 = scmp.ne.s32.totalorder %s103, %s106
    %p112 = scmp.eq.s32.totalorder %s21, 0
    %p113 = por %p111, %p112
    %p114 = scmp.ne.s32.totalorder %s103, %s106
    %p115 = scmp.eq.s32.totalorder %s26, 4
    %p116 = por %p114, %p115
    %p117 = scmp.ne.s32.totalorder %s106, %s107
    %p118 = scmp.eq.s32.totalorder %s26, 0
    %p119 = por %p117, %p118
    %p120 = scmp.ne.s32.totalorder %s106, %s107
    %p121 = scmp.eq.s32.totalorder %s27, 4
    %p122 = por %p120, %p121
    %p124 = scmp.ne.s32.totalorder %s107, %s123
    %p125 = scmp.eq.s32.totalorder %s27, 0
    %p126 = por %p124, %p125
    %s127 = ssub.s32 %s28, %s40
    %s128 = ssub.s32 %s29, %s36
    %s129 = sor.u32 %s127, %s128
    %p130 = scmp.eq.s32.totalorder %s129, 0
    %s132 = sadd.s32 %s131, 1
    %s133 = scalar_select %p130, %s131, %s132
    %p136 = pneg %p130
    %p137 = scmp.eq.s32.totalorder %s21, 4
    %p138 = por %p136, %p137
    %p139 = scmp.ne.s32.totalorder %s131, %s134
    %p140 = scmp.eq.s32.totalorder %s21, 0
    %p141 = por %p139, %p140
    %p142 = scmp.ne.s32.totalorder %s131, %s134
    %p143 = scmp.eq.s32.totalorder %s26, 4
    %p144 = por %p142, %p143
    %p145 = scmp.ne.s32.totalorder %s134, %s135
    %p146 = scmp.eq.s32.totalorder %s26, 0
    %p147 = por %p145, %p146
    %p148 = scmp.ne.s32.totalorder %s134, %s135
    %p149 = scmp.eq.s32.totalorder %s27, 4
    %p150 = por %p148, %p149
    %p152 = scmp.ne.s32.totalorder %s135, %s151
    %p153 = scmp.eq.s32.totalorder %s27, 0
    %p154 = por %p152, %p153
    %p155 = scmp.le.s32.totalorder 1, %s21
    %p156 = scmp.lt.s32.totalorder %s21, 6
    %p157 = pnand %p155, %p156
    %p158 = pneg %p157
    // Predicated region
    $region9: #{tpu_custom_call.1} parent=5 // pred_check
      _
    $region10: #{tpu_custom_call.1} parent=5 // pred_check_branch
      %160 = sbr.rel (%p157) target = $region12
    $region11: #{tpu_custom_call.1} parent=5 // pred_region
      %s161 = ssub.s32 %s21, 1
    $region12: #{tpu_custom_call.1} parent=5 // pred_fallthru
      _
    %p162 = scmp.lt.s32.totalorder %s21, 5
    // Predicated region
    $region13: #{tpu_custom_call.1} parent=5 // pred_check
      %p163 = pneg %p162
    $region14: #{tpu_custom_call.1} parent=5 // pred_check_branch
      %165 = sbr.rel (%p163) target = $region16
    $region15: #{tpu_custom_call.1} parent=5 // pred_region
      // Predicated region
      $region17: #{tpu_custom_call.1} parent=15 // pred_check
        %p166 = pneg %p53
      $region18: #{tpu_custom_call.1} parent=15 // pred_check_branch
        %168 = sbr.rel (%p166) target = $region20
      $region19: #{tpu_custom_call.1} parent=15 // pred_region
        %s169 = smul.u32 16, %s28
        %p170 = scmp.lt.s32.totalorder %s169, 79
        %s171 = scalar_select %p170, %s169, 79
        %s172 = smul.addr %s171, 4
        %s173 = scalar_lea.vmem %s2, %s172
        %s174 = smul.u32 16, %s28
      $region20: #{tpu_custom_call.1} parent=15 // pred_fallthru
        _
      // Predicated region
      $region21: #{tpu_custom_call.1} parent=15 // pred_check
        %p175 = pneg %p79
      $region22: #{tpu_custom_call.1} parent=15 // pred_check_branch
        %177 = sbr.rel (%p175) target = $region24
      $region23: #{tpu_custom_call.1} parent=15 // pred_region
        %s178 = smul.u32 16, %s28
        %p179 = scmp.lt.s32.totalorder %s178, 79
        %s180 = scalar_select %p179, %s178, 79
        %s181 = smul.addr %s180, 8
        %s182 = scalar_lea.vmem %s3, %s181
        %s183 = smul.u32 16, %s28
      $region24: #{tpu_custom_call.1} parent=15 // pred_fallthru
        _
      // Predicated region
      $region25: #{tpu_custom_call.1} parent=15 // pred_check
        %p184 = pneg %p113
      $region26: #{tpu_custom_call.1} parent=15 // pred_check_branch
        %186 = sbr.rel (%p184) target = $region28
      $region27: #{tpu_custom_call.1} parent=15 // pred_region
        %s187 = sld [smem:[#allocation3 + %s28]]
        %s188 = sld [smem:[#allocation4 + %s28]]
        %s189 = smul.u32 %s29, %s188
        %p190 = scmp.lt.s32.totalorder %s187, 3
        %s191 = scalar_select %p190, %s187, 3
        %p192 = scmp.lt.s32.totalorder %s189, 0
        %s193 = scalar_select %p192, %s189, 0
        %s194 = smul.addr %s191, 8
        %s195 = sadd.s32 %s193, %s194
        %s196 = smul.addr %s195, 4
        %s197 = scalar_lea.vmem %s4, %s196
        %s198 = sld [smem:[#allocation3 + %s28]]
        %s199 = sld [smem:[#allocation4 + %s28]]
        %s200 = smul.u32 %s29, %s199
      $region28: #{tpu_custom_call.1} parent=15 // pred_fallthru
        _
    $region16: #{tpu_custom_call.1} parent=5 // pred_fallthru
      _
    %p201 = scmp.le.s32.totalorder 1, %s21
    %p202 = scmp.lt.s32.totalorder %s21, 6
    %p203 = pnand %p201, %p202
    %p204 = pneg %p203
    // Predicated region
    $region29: #{tpu_custom_call.1} parent=5 // pred_check
      _
    $region30: #{tpu_custom_call.1} parent=5 // pred_check_branch
      %206 = sbr.rel (%p203) target = $region32
    $region31: #{tpu_custom_call.1} parent=5 // pred_region
      %s207 = ssub.s32 %s21, 1
      %s208 = smul.u32 16, %s30
      %p209 = scmp.lt.s32.totalorder %s208, 79
      %s210 = scalar_select %p209, %s208, 79
      %s211 = smul.addr %s210, 4
      %s212 = scalar_lea.vmem %s2, %s211
      %p213 = pneg %p59
      %p214 = pneg %p56
      %s215 = smul.u32 16, %s30
      %p216 = scmp.lt.s32.totalorder %s215, 79
      %s217 = scalar_select %p216, %s215, 79
      %s218 = smul.addr %s217, 8
      %s219 = scalar_lea.vmem %s3, %s218
      %p220 = pneg %p85
      %p221 = pneg %p82
      %s222 = sld [smem:[#allocation3 + %s30]]
      %s223 = sld [smem:[#allocation4 + %s30]]
      %s224 = smul.u32 %s31, %s223
      %p225 = scmp.lt.s32.totalorder %s222, 3
      %s226 = scalar_select %p225, %s222, 3
      %p227 = scmp.lt.s32.totalorder %s224, 0
      %s228 = scalar_select %p227, %s224, 0
      %s229 = smul.addr %s226, 8
      %s230 = sadd.s32 %s228, %s229
      %s231 = smul.addr %s230, 4
      %s232 = scalar_lea.vmem %s4, %s231
      %p233 = pneg %p119
      %p234 = pneg %p116
      %p235 = pneg %p147
      %p236 = pneg %p144
      %s237 = smul.u32 16, %s30
      %p238 = scmp.lt.s32.totalorder %s237, 79
      %s239 = scalar_select %p238, %s237, 79
      %p240 = scmp.lt.s32.totalorder %s31, 0
      %s241 = scalar_select %p240, %s31, 0
      %s242 = sadd.s32 %s241, %s239
      %s243 = smul.addr %s242, 8
      %s244 = scalar_lea.vmem %s5, %s243
      %s245 = smul.u32 16, %s30
      %p246 = scmp.lt.s32.totalorder %s245, 79
      %s247 = scalar_select %p246, %s245, 79
      %s248 = smul.addr %s247, 4
      %s249 = scalar_lea.vmem %s2, %s248
      %s250 = smul.u32 16, %s30
      %s251 = smul.u32 16, %s30
      %p252 = scmp.lt.s32.totalorder %s251, 79
      %s253 = scalar_select %p252, %s251, 79
      %s254 = smul.addr %s253, 8
      %s255 = scalar_lea.vmem %s3, %s254
      %s256 = smul.u32 16, %s30
      %s257 = sld [smem:[#allocation3 + %s30]]
      %s258 = sld [smem:[#allocation4 + %s30]]
      %s259 = smul.u32 %s31, %s258
      %p260 = scmp.lt.s32.totalorder %s257, 3
      %s261 = scalar_select %p260, %s257, 3
      %p262 = scmp.lt.s32.totalorder %s259, 0
      %s263 = scalar_select %p262, %s259, 0
      %s264 = smul.addr %s261, 8
      %s265 = sadd.s32 %s263, %s264
      %s266 = smul.addr %s265, 4
      %s267 = scalar_lea.vmem %s4, %s266
      %s268 = sld [smem:[#allocation3 + %s30]]
      %s269 = sld [smem:[#allocation4 + %s30]]
      %s270 = smul.u32 %s31, %s269
      %s271 = smul.u32 16, %s30
      %p272 = scmp.lt.s32.totalorder %s271, 79
      %s273 = scalar_select %p272, %s271, 79
      %p274 = scmp.lt.s32.totalorder %s31, 0
      %s275 = scalar_select %p274, %s31, 0
      %s276 = sadd.s32 %s275, %s273
      %s277 = smul.addr %s276, 8
      %s278 = scalar_lea.vmem %s5, %s277
      %s279 = smul.u32 16, %s30
      %s281 = sld [smem:[#allocation4 + %s30]]
      %p282 = scmp.gt.s32.totalorder %s281, 0
      // Predicated region
      $region33: #{tpu_custom_call.1} parent=31 // pred_check
        %p283 = pneg %p282
      $region34: #{tpu_custom_call.1} parent=31 // pred_check_branch
        %285 = sbr.rel (%p283) target = $region36
      $region35: #{tpu_custom_call.1} parent=31 // pred_region
        %v286 = vld [vmem:[%s249] sm:$0xf]
        %v287 = vld [vmem:[%s249 + $0x4] sm:$0xf]
        %v288 = vld [vmem:[%s249 + $0x8] sm:$0xf]
        %v289 = vld [vmem:[%s249 + $0xc] sm:$0xf]
        %v290 = vld [vmem:[%s249 + $0x10] sm:$0xf]
        %v291 = vld [vmem:[%s249 + $0x14] sm:$0xf]
        %v292 = vld [vmem:[%s249 + $0x18] sm:$0xf]
        %v293 = vld [vmem:[%s249 + $0x1c] sm:$0xf]
        %v294 = vld [vmem:[%s249 + $0x20] sm:$0xf]
        %v295 = vld [vmem:[%s249 + $0x24] sm:$0xf]
        %v296 = vld [vmem:[%s249 + $0x28] sm:$0xf]
        %v297 = vld [vmem:[%s249 + $0x2c] sm:$0xf]
        %v298 = vld [vmem:[%s249 + $0x30] sm:$0xf]
        %v299 = vld [vmem:[%s249 + $0x34] sm:$0xf]
        %v300 = vld [vmem:[%s249 + $0x38] sm:$0xf]
        %v301 = vld [vmem:[%s249 + $0x3c] sm:$0xf]
        %v302 = vld [vmem:[%s267] sm:$0xf]
        %v303 = vld [vmem:[%s267 + $0x4] sm:$0xf]
        %v304 = vld [vmem:[%s267 + $0x8] sm:$0xf]
        %v305 = vld [vmem:[%s267 + $0xc] sm:$0xf]
        %v306 = vld [vmem:[%s267 + $0x10] sm:$0xf]
        %v307 = vld [vmem:[%s267 + $0x14] sm:$0xf]
        %v308 = vld [vmem:[%s267 + $0x18] sm:$0xf]
        %v309 = vld [vmem:[%s267 + $0x1c] sm:$0xf]
        %v326 = vunpack.c.l.b16 %v286
        %v327 = vunpack.c.l.b16 %v287
        %v328 = vunpack.c.l.b16 %v288
        %v329 = vunpack.c.l.b16 %v289
        %v330 = vunpack.c.l.b16 %v290
        %v331 = vunpack.c.l.b16 %v291
        %v332 = vunpack.c.l.b16 %v292
        %v333 = vunpack.c.l.b16 %v293
        %v334 = vunpack.c.l.b16 %v294
        %v335 = vunpack.c.l.b16 %v295
        %v336 = vunpack.c.l.b16 %v296
        %v337 = vunpack.c.l.b16 %v297
        %v338 = vunpack.c.l.b16 %v298
        %v339 = vunpack.c.l.b16 %v299
        %v340 = vunpack.c.l.b16 %v300
        %v341 = vunpack.c.l.b16 %v301
        %v342 = vpack.c.b16 %v327, %v326
        %v343 = vpack.c.b16 %v329, %v328
        %v344 = vpack.c.b16 %v331, %v330
        %v345 = vpack.c.b16 %v333, %v332
        %v346 = vpack.c.b16 %v335, %v334
        %v347 = vpack.c.b16 %v337, %v336
        %v348 = vpack.c.b16 %v339, %v338
        %v349 = vpack.c.b16 %v341, %v340
        %v358 = vunpack.c.l.b16 %v302
        %v359 = vunpack.c.l.b16 %v303
        %v360 = vunpack.c.l.b16 %v304
        %v361 = vunpack.c.l.b16 %v305
        %v362 = vunpack.c.l.b16 %v306
        %v363 = vunpack.c.l.b16 %v307
        %v364 = vunpack.c.l.b16 %v308
        %v365 = vunpack.c.l.b16 %v309
        %v366 = vpack.c.b16 %v359, %v358
        %v367 = vpack.c.b16 %v361, %v360
        %v368 = vpack.c.b16 %v363, %v362
        %v369 = vpack.c.b16 %v365, %v364
        %vm374 = vcmask 523264
        %v376 = vsel %vm374, %v342, 0
        %v379 = vsel %vm374, %v343, 0
        %v382 = vsel %vm374, %v344, 0
        %v385 = vsel %vm374, %v345, 0
        %v388 = vsel %vm374, %v346, 0
        %v391 = vsel %vm374, %v347, 0
        %v394 = vsel %vm374, %v348, 0
        %v397 = vsel %vm374, %v349, 0
        %399 = vmatprep.subr.bf16.mxu0 0
        %400 = vmatpush1.bf16.msra.mxu0 %v366
        %401 = vmatprep.subr.bf16.mxu0 0
        %402 = vmatpush1.bf16.msra.mxu0 %v367
        %403 = vmatprep.subr.bf16.mxu0 0
        %404 = vmatpush1.bf16.msra.mxu0 %v368
        %405 = vmatprep.subr.bf16.mxu0 0
        %406 = vmatpush1.bf16.msra.mxu0 %v369
        %407 = vmatprep.subr.bf16.mxu0 0
        %408 = vmatpush1.bf16.msra.mxu0 0
        %409 = vmatprep.subr.bf16.mxu0 0
        %410 = vmatpush1.bf16.msra.mxu0 0
        %411 = vmatprep.subr.bf16.mxu0 0
        %412 = vmatpush1.bf16.msra.mxu0 0
        %413 = vmatprep.subr.bf16.mxu0 0
        %414 = vmatpush1.bf16.msra.mxu0 0
        %415 = vmatprep.subr.bf16.mxu0 0
        %416 = vmatpush1.bf16.msra.mxu0 0
        %417 = vmatprep.subr.bf16.mxu0 0
        %418 = vmatpush1.bf16.msra.mxu0 0
        %419 = vmatprep.subr.bf16.mxu0 0
        %420 = vmatpush1.bf16.msra.mxu0 0
        %421 = vmatprep.subr.bf16.mxu0 0
        %422 = vmatpush1.bf16.msra.mxu0 0
        %423 = vmatprep.subr.bf16.mxu0 0
        %424 = vmatpush1.bf16.msra.mxu0 0
        %425 = vmatprep.subr.bf16.mxu0 0
        %426 = vmatpush1.bf16.msra.mxu0 0
        %427 = vmatprep.subr.bf16.mxu0 0
        %428 = vmatpush1.bf16.msra.mxu0 0
        %429 = vmatprep.subr.bf16.mxu0 0
        %430 = vmatpush1.bf16.msra.mxu0 0
        %431 = vmatprep.mubr.bf16.mxu0 0
        %432 = vmatmul.mubr.bf16.gmra.mrb[0].mxu0 %v376
        %v433 = vpop.f32.mrb[0].mxu0
        %v434 = vadd.f32 0.0, %v433
        %v435 = vpop.f32.mrb[0].mxu0
        %v436 = vpop.f32.mrb[0].mxu0
        %v437 = vadd.f32 0.0, %v436
        %v438 = vpop.f32.mrb[0].mxu0
        %439 = vmatprep.mubr.bf16.mxu0 0
        %440 = vmatmul.mubr.bf16.gmra.mrb[0].mxu0 %v379
        %v441 = vpop.f32.mrb[0].mxu0
        %v442 = vadd.f32 0.0, %v441
        %v443 = vpop.f32.mrb[0].mxu0
        %v444 = vpop.f32.mrb[0].mxu0
        %v445 = vadd.f32 0.0, %v444
        %v446 = vpop.f32.mrb[0].mxu0
        %447 = vmatprep.mubr.bf16.mxu0 0
        %448 = vmatmul.mubr.bf16.gmra.mrb[0].mxu0 %v382
        %v449 = vpop.f32.mrb[0].mxu0
        %v450 = vadd.f32 0.0, %v449
        %v451 = vpop.f32.mrb[0].mxu0
        %v452 = vpop.f32.mrb[0].mxu0
        %v453 = vadd.f32 0.0, %v452
        %v454 = vpop.f32.mrb[0].mxu0
        %455 = vmatprep.mubr.bf16.mxu0 0
        %456 = vmatmul.mubr.bf16.gmra.mrb[0].mxu0 %v385
        %v457 = vpop.f32.mrb[0].mxu0
        %v458 = vadd.f32 0.0, %v457
        %v459 = vpop.f32.mrb[0].mxu0
        %v460 = vpop.f32.mrb[0].mxu0
        %v461 = vadd.f32 0.0, %v460
        %v462 = vpop.f32.mrb[0].mxu0
        %463 = vmatprep.mubr.bf16.mxu0 0
        %464 = vmatmul.mubr.bf16.gmra.mrb[0].mxu0 %v388
        %v465 = vpop.f32.mrb[0].mxu0
        %v466 = vadd.f32 0.0, %v465
        %v467 = vpop.f32.mrb[0].mxu0
        %v468 = vpop.f32.mrb[0].mxu0
        %v469 = vadd.f32 0.0, %v468
        %v470 = vpop.f32.mrb[0].mxu0
        %471 = vmatprep.mubr.bf16.mxu0 0
        %472 = vmatmul.mubr.bf16.gmra.mrb[0].mxu0 %v391
        %v473 = vpop.f32.mrb[0].mxu0
        %v474 = vadd.f32 0.0, %v473
        %v475 = vpop.f32.mrb[0].mxu0
        %v476 = vpop.f32.mrb[0].mxu0
        %v477 = vadd.f32 0.0, %v476
        %v478 = vpop.f32.mrb[0].mxu0
        %479 = vmatprep.mubr.bf16.mxu0 0
        %480 = vmatmul.mubr.bf16.gmra.mrb[0].mxu0 %v394
        %v481 = vpop.f32.mrb[0].mxu0
        %v482 = vadd.f32 0.0, %v481
        %v483 = vpop.f32.mrb[0].mxu0
        %v484 = vpop.f32.mrb[0].mxu0
        %v485 = vadd.f32 0.0, %v484
        %v486 = vpop.f32.mrb[0].mxu0
        %487 = vmatprep.mubr.bf16.mxu0 0
        %488 = vmatmul.mubr.bf16.gmra.mrb[0].mxu0 %v397
        %v489 = vpop.f32.mrb[0].mxu0
        %v490 = vadd.f32 0.0, %v489
        %v491 = vpop.f32.mrb[0].mxu0
        %v492 = vpop.f32.mrb[0].mxu0
        %v493 = vadd.f32 0.0, %v492
        %v494 = vpop.f32.mrb[0].mxu0
        %495 = vdwg.mxu0
        %v496 = vld [vmem:[%s255] sm:$0xff]
        %v497 = vld [vmem:[%s255 + $0x8] sm:$0xff]
        %v498 = vld [vmem:[%s255 + $0x10] sm:$0xff]
        %v499 = vld [vmem:[%s255 + $0x18] sm:$0xff]
        %v500 = vld [vmem:[%s255 + $0x20] sm:$0xff]
        %v501 = vld [vmem:[%s255 + $0x28] sm:$0xff]
        %v502 = vld [vmem:[%s255 + $0x30] sm:$0xff]
        %v503 = vld [vmem:[%s255 + $0x38] sm:$0xff]
        %v504 = vld [vmem:[%s255 + $0x40] sm:$0xff]
        %v505 = vld [vmem:[%s255 + $0x48] sm:$0xff]
        %v506 = vld [vmem:[%s255 + $0x50] sm:$0xff]
        %v507 = vld [vmem:[%s255 + $0x58] sm:$0xff]
        %v508 = vld [vmem:[%s255 + $0x60] sm:$0xff]
        %v509 = vld [vmem:[%s255 + $0x68] sm:$0xff]
        %v510 = vld [vmem:[%s255 + $0x70] sm:$0xff]
        %v511 = vld [vmem:[%s255 + $0x78] sm:$0xff]
        %513 = vset.pattern.permute.xlu0 0
        %514 = vperm.xlu0 %513, %v496
        %v515 = vpop.permute.xlu0 %514
        %518 = vset.pattern.permute.xlu0 0
        %519 = vperm.xlu0 %518, %v497
        %v520 = vpop.permute.xlu0 %519
        %523 = vset.pattern.permute.xlu0 0
        %524 = vperm.xlu0 %523, %v498
        %v525 = vpop.permute.xlu0 %524
        %528 = vset.pattern.permute.xlu0 0
        %529 = vperm.xlu0 %528, %v499
        %v530 = vpop.permute.xlu0 %529
        %533 = vset.pattern.permute.xlu0 0
        %534 = vperm.xlu0 %533, %v500
        %v535 = vpop.permute.xlu0 %534
        %538 = vset.pattern.permute.xlu0 0
        %539 = vperm.xlu0 %538, %v501
        %v540 = vpop.permute.xlu0 %539
        %543 = vset.pattern.permute.xlu0 0
        %544 = vperm.xlu0 %543, %v502
        %v545 = vpop.permute.xlu0 %544
        %548 = vset.pattern.permute.xlu0 0
        %549 = vperm.xlu0 %548, %v503
        %v550 = vpop.permute.xlu0 %549
        %553 = vset.pattern.permute.xlu0 0
        %554 = vperm.xlu0 %553, %v504
        %v555 = vpop.permute.xlu0 %554
        %558 = vset.pattern.permute.xlu0 0
        %559 = vperm.xlu0 %558, %v505
        %v560 = vpop.permute.xlu0 %559
        %563 = vset.pattern.permute.xlu0 0
        %564 = vperm.xlu0 %563, %v506
        %v565 = vpop.permute.xlu0 %564
        %568 = vset.pattern.permute.xlu0 0
        %569 = vperm.xlu0 %568, %v507
        %v570 = vpop.permute.xlu0 %569
        %573 = vset.pattern.permute.xlu0 0
        %574 = vperm.xlu0 %573, %v508
        %v575 = vpop.permute.xlu0 %574
        %578 = vset.pattern.permute.xlu0 0
        %579 = vperm.xlu0 %578, %v509
        %v580 = vpop.permute.xlu0 %579
        %583 = vset.pattern.permute.xlu0 0
        %584 = vperm.xlu0 %583, %v510
        %v585 = vpop.permute.xlu0 %584
        %588 = vset.pattern.permute.xlu0 0
        %589 = vperm.xlu0 %588, %v511
        %v590 = vpop.permute.xlu0 %589
        %v592 = vmul.f32 %v434, %v515
        %v593 = vmul.f32 %v437, %v520
        %v594 = vmul.f32 %v442, %v525
        %v595 = vmul.f32 %v445, %v530
        %v596 = vmul.f32 %v450, %v535
        %v597 = vmul.f32 %v453, %v540
        %v598 = vmul.f32 %v458, %v545
        %v599 = vmul.f32 %v461, %v550
        %v600 = vmul.f32 %v466, %v555
        %v601 = vmul.f32 %v469, %v560
        %v602 = vmul.f32 %v474, %v565
        %v603 = vmul.f32 %v477, %v570
        %v604 = vmul.f32 %v482, %v575
        %v605 = vmul.f32 %v485, %v580
        %v606 = vmul.f32 %v490, %v585
        %v607 = vmul.f32 %v493, %v590
        %608 = vst.msk [vmem:[%s278] sm:$0xff] %vm374, %v592
        %609 = vst.msk [vmem:[%s278 + $0x8] sm:$0xff] %vm374, %v593
        %610 = vst.msk [vmem:[%s278 + $0x10] sm:$0xff] %vm374, %v594
        %611 = vst.msk [vmem:[%s278 + $0x18] sm:$0xff] %vm374, %v595
        %612 = vst.msk [vmem:[%s278 + $0x20] sm:$0xff] %vm374, %v596
        %613 = vst.msk [vmem:[%s278 + $0x28] sm:$0xff] %vm374, %v597
        %614 = vst.msk [vmem:[%s278 + $0x30] sm:$0xff] %vm374, %v598
        %615 = vst.msk [vmem:[%s278 + $0x38] sm:$0xff] %vm374, %v599
        %616 = vst.msk [vmem:[%s278 + $0x40] sm:$0xff] %vm374, %v600
        %617 = vst.msk [vmem:[%s278 + $0x48] sm:$0xff] %vm374, %v601
        %618 = vst.msk [vmem:[%s278 + $0x50] sm:$0xff] %vm374, %v602
        %619 = vst.msk [vmem:[%s278 + $0x58] sm:$0xff] %vm374, %v603
        %620 = vst.msk [vmem:[%s278 + $0x60] sm:$0xff] %vm374, %v604
        %621 = vst.msk [vmem:[%s278 + $0x68] sm:$0xff] %vm374, %v605
        %622 = vst.msk [vmem:[%s278 + $0x70] sm:$0xff] %vm374, %v606
        %623 = vst.msk [vmem:[%s278 + $0x78] sm:$0xff] %vm374, %v607
      $region36: #{tpu_custom_call.1} parent=31 // pred_fallthru
        _
      %p624 = scmp.le.s32.totalorder %s281, 0
      // Predicated region
      $region37: #{tpu_custom_call.1} parent=31 // pred_check
        %p625 = pneg %p624
      $region38: #{tpu_custom_call.1} parent=31 // pred_check_branch
        %627 = sbr.rel (%p625) target = $region40
      $region39: #{tpu_custom_call.1} parent=31 // pred_region
        %vm628 = vcmask 523264
        %629 = vst.msk [vmem:[%s278] sm:$0xff] %vm628, 0.0
        %630 = vst.msk [vmem:[%s278 + $0x8] sm:$0xff] %vm628, 0.0
        %631 = vst.msk [vmem:[%s278 + $0x10] sm:$0xff] %vm628, 0.0
        %632 = vst.msk [vmem:[%s278 + $0x18] sm:$0xff] %vm628, 0.0
        %633 = vst.msk [vmem:[%s278 + $0x20] sm:$0xff] %vm628, 0.0
        %634 = vst.msk [vmem:[%s278 + $0x28] sm:$0xff] %vm628, 0.0
        %635 = vst.msk [vmem:[%s278 + $0x30] sm:$0xff] %vm628, 0.0
        %636 = vst.msk [vmem:[%s278 + $0x38] sm:$0xff] %vm628, 0.0
        %637 = vst.msk [vmem:[%s278 + $0x40] sm:$0xff] %vm628, 0.0
        %638 = vst.msk [vmem:[%s278 + $0x48] sm:$0xff] %vm628, 0.0
        %639 = vst.msk [vmem:[%s278 + $0x50] sm:$0xff] %vm628, 0.0
        %640 = vst.msk [vmem:[%s278 + $0x58] sm:$0xff] %vm628, 0.0
        %641 = vst.msk [vmem:[%s278 + $0x60] sm:$0xff] %vm628, 0.0
        %642 = vst.msk [vmem:[%s278 + $0x68] sm:$0xff] %vm628, 0.0
        %643 = vst.msk [vmem:[%s278 + $0x70] sm:$0xff] %vm628, 0.0
        %644 = vst.msk [vmem:[%s278 + $0x78] sm:$0xff] %vm628, 0.0
      $region40: #{tpu_custom_call.1} parent=31 // pred_fallthru
        _
      %s645 = smul.u32 16, %s30
      %p646 = scmp.lt.s32.totalorder %s645, 79
      %s647 = scalar_select %p646, %s645, 79
      %p648 = scmp.lt.s32.totalorder %s31, 0
      %s649 = scalar_select %p648, %s31, 0
      %s650 = sadd.s32 %s649, %s647
      %s651 = smul.addr %s650, 8
      %s652 = scalar_lea.vmem %s5, %s651
      // Predicated region
      $region41: #{tpu_custom_call.1} parent=31 // pred_check
        %p653 = pneg %p144
      $region42: #{tpu_custom_call.1} parent=31 // pred_check_branch
        %655 = sbr.rel (%p653) target = $region44
      $region43: #{tpu_custom_call.1} parent=31 // pred_region
        %s656 = smul.u32 16, %s30
      $region44: #{tpu_custom_call.1} parent=31 // pred_fallthru
        _
    $region32: #{tpu_custom_call.1} parent=5 // pred_fallthru
      _
    %p657 = scmp.le.s32.totalorder 2, %s21
    // Predicated region
    $region45: #{tpu_custom_call.1} parent=5 // pred_check
      %p658 = pneg %p657
    $region46: #{tpu_custom_call.1} parent=5 // pred_check_branch
      %660 = sbr.rel (%p658) target = $region48
    $region47: #{tpu_custom_call.1} parent=5 // pred_region
      %s661 = ssub.s32 %s21, 2
      // Predicated region
      $region49: #{tpu_custom_call.1} parent=47 // pred_check
        %p662 = pneg %p150
      $region50: #{tpu_custom_call.1} parent=47 // pred_check_branch
        %664 = sbr.rel (%p662) target = $region52
      $region51: #{tpu_custom_call.1} parent=47 // pred_region
        %s665 = smul.u32 16, %s32
        %p666 = scmp.lt.s32.totalorder %s665, 79
        %s667 = scalar_select %p666, %s665, 79
        %p668 = scmp.lt.s32.totalorder %s33, 0
        %s669 = scalar_select %p668, %s33, 0
        %s670 = sadd.s32 %s669, %s667
        %s671 = smul.addr %s670, 8
        %s672 = scalar_lea.vmem %s5, %s671
      $region52: #{tpu_custom_call.1} parent=47 // pred_fallthru
        _
    $region48: #{tpu_custom_call.1} parent=5 // pred_fallthru
      _
  $region6: #{tpu_custom_call.1} parent=0 // loop_footer
    %s25 = sadd.s32 1, %s21
  $region7: #{tpu_custom_call.1} parent=0 // loop_footer_branch
    %20 = sbr.rel target = $region3
  $region8: #{tpu_custom_call.1} parent=0 // loop_exit
    _

</llo_original>
